<compile_context>
chip_gen: v7x
topology: tpu7x:2x2x1
jax: 0.10.0
libtpu: 0.0.40
codegen_flags: <defaults>
</compile_context>

<pallas_src>
import math

import jax
import jax.numpy as jnp
from jax.experimental import pallas as pl
from jax.experimental.pallas import tpu as pltpu


def _qnet_kernel(x_ref, a_ref, w1_ref, b1_ref, w2_ref, b2_ref, w3_ref, b3_ref,
                 o_ref):
    """Fused 3-layer MLP on one tb-row batch tile.

    fc1: single MXU K-pass over the lane-concatenated [x | a] tile.
    fc2: (tb,256) @ (256,256) bf16, f32 accumulate.
    fc3: (1,256) . (tb,256)^T contraction -> lane-dense (1, tb) result.
    """
    # In-kernel concat along lanes (do it in f32 layout, cast once for the MXU).
    x32 = x_ref[...].astype(jnp.float32)
    a32 = a_ref[...].astype(jnp.float32)
    xa = jnp.concatenate([x32, a32], axis=-1).astype(jnp.bfloat16)

    # fc1 + ReLU (single fused K-pass: K = obs_dim + act_dim).
    h1 = jnp.dot(xa, w1_ref[...], preferred_element_type=jnp.float32)
    h1 = jnp.maximum(h1 + b1_ref[...], 0.0)

    # fc2 + ReLU.
    h2 = jnp.dot(h1.astype(jnp.bfloat16), w2_ref[...],
                 preferred_element_type=jnp.float32)
    h2 = jnp.maximum(h2 + b2_ref[...], 0.0)

    # fc3 (256 -> 1), computed lane-dense: contract the 256 axis of the weight
    # row against the 256 axis of h2, giving a (1, tb) row instead of a
    # lane-sparse (tb, 1) column (no transpose of the result needed).
    q = jax.lax.dot_general(
        w3_ref[...], h2.astype(jnp.bfloat16),
        dimension_numbers=(((1,), (1,)), ((), ())),
        preferred_element_type=jnp.float32)
    q = q + b3_ref[0]                                   # SMEM scalar bias
    o_ref[...] = q.reshape(o_ref.shape).astype(o_ref.dtype)


def _cdiv(a, b):
    return -(-a // b)


def _round_up(n, m):
    return ((n + m - 1) // m) * m


def _choose_batch_tiling(batch, block_b):
    """Pick (tb, grid_b).

    tb is a multiple of 16 (safe for f32 and packed bf16 activation streams),
    at most ~block_b, sized so padding is at most 15 rows, and grid_b >= 2
    whenever batch > 16 so the 'parallel' grid axis keeps both v7x TensorCores
    busy.  Tiny batches fall back to one full-batch tile (full-dim blocks use
    the 'equals array dim' escape hatch of the (8,128) rule).
    """
    if batch <= 16:
        return batch, 1
    grid_b = max(2, _cdiv(batch, block_b))
    tb = _round_up(_cdiv(batch, grid_b), 16)
    grid_b = _cdiv(batch, tb)
    return tb, grid_b


def qnetwork_td3_forward(x, a, params, *, block_b=2048):
    """Pallas wrapper. x: [B, obs_dim], a: [B, act_dim]  ->  q: [B, 1] (f32)."""
    w1, b1, w2, b2, w3, b3 = params
    batch, obs_dim = x.shape
    act_dim = a.shape[1]
    assert w1.shape[0] == obs_dim + act_dim

    # Resident parameters: bf16 weights, f32 biases (fc3 bias lives in SMEM).
    w1b = w1.astype(jnp.bfloat16)                       # (obs+act, 256)
    w2b = w2.astype(jnp.bfloat16)                       # (256, 256)
    w3r = w3.reshape(1, -1).astype(jnp.bfloat16)        # (1, 256)
    b1f = b1.reshape(1, -1).astype(jnp.float32)         # (1, 256)
    b2f = b2.reshape(1, -1).astype(jnp.float32)         # (1, 256)
    b3s = b3.reshape(1).astype(jnp.float32)             # (1,) SMEM scalar

    # NOTE: x / a keep their incoming float dtype (bf16 producers stream bf16);
    # the kernel casts to bf16 at the MXU and accumulates in f32.
    tb, grid_b = _choose_batch_tiling(batch, block_b)
    padded = tb * grid_b
    if padded != batch:
        pad = padded - batch
        x = jnp.pad(x, ((0, pad), (0, 0)))
        a = jnp.pad(a, ((0, pad), (0, 0)))

    resident = lambda arr: pl.BlockSpec(arr.shape, lambda i: (0,) * arr.ndim)

    q = pl.pallas_call(
        _qnet_kernel,
        out_shape=jax.ShapeDtypeStruct((grid_b, 1, tb), jnp.float32),
        grid=(grid_b,),
        in_specs=[
            pl.BlockSpec((tb, obs_dim), lambda i: (i, 0)),      # x tile
            pl.BlockSpec((tb, act_dim), lambda i: (i, 0)),      # a tile
            resident(w1b),
            resident(b1f),
            resident(w2b),
            resident(b2f),
            resident(w3r),
            pl.BlockSpec(memory_space=pltpu.MemorySpace.SMEM),  # fc3 bias
        ],
        out_specs=pl.BlockSpec((1, 1, tb), lambda i: (i, 0, 0)),
        compiler_params=pltpu.CompilerParams(
            dimension_semantics=("parallel",),
            vmem_limit_bytes=32 * 1024 * 1024,
        ),
    )(x, a, w1b, b1f, w2b, b2f, w3r, b3s)

    q = q.reshape(padded, 1)
    if padded != batch:
        q = q[:batch]
    return q


def init_params(key, obs_dim, act_dim, hidden=256):
    """Deterministic init mimicking nn.Linear (uniform +/- 1/sqrt(fan_in)).

    Weights are stored transposed relative to PyTorch: [in_features, out_features].
    Biases are stored as [1, out_features].
    """
    in_dim = obs_dim + act_dim
    dims = [(in_dim, hidden), (hidden, hidden), (hidden, 1)]
    params = []
    keys = jax.random.split(key, 2 * len(dims))
    for i, (fan_in, fan_out) in enumerate(dims):
        bound = 1.0 / math.sqrt(fan_in)
        w = jax.random.uniform(keys[2 * i], (fan_in, fan_out),
                               minval=-bound, maxval=bound, dtype=jnp.float32)
        b = jax.random.uniform(keys[2 * i + 1], (1, fan_out),
                               minval=-bound, maxval=bound, dtype=jnp.float32)
        params.extend([w, b])
    return tuple(params)


def _reference(x, a, params):
    """Plain-JAX reference with the same bf16-weight / f32-accumulate recipe."""
    w1, b1, w2, b2, w3, b3 = params
    xa = jnp.concatenate([x.astype(jnp.float32), a.astype(jnp.float32)], axis=1)
    h1 = jnp.dot(xa.astype(jnp.bfloat16), w1.astype(jnp.bfloat16),
                 preferred_element_type=jnp.float32)
    h1 = jnp.maximum(h1 + b1.reshape(1, -1), 0.0)
    h2 = jnp.dot(h1.astype(jnp.bfloat16), w2.astype(jnp.bfloat16),
                 preferred_element_type=jnp.float32)
    h2 = jnp.maximum(h2 + b2.reshape(1, -1), 0.0)
    q = jnp.dot(h2.astype(jnp.bfloat16), w3.astype(jnp.bfloat16),
                preferred_element_type=jnp.float32)
    return q + b3.reshape(1, -1)


if __name__ == "__main__":
    key = jax.random.PRNGKey(0)
    k_x, k_a, k_p = jax.random.split(key, 3)

    # Small-shape smoke test (matches the TD3 critic's obs/action concat).
    batch, obs_dim, act_dim = 2, 16, 8
    x = jax.random.normal(k_x, (batch, obs_dim), dtype=jnp.float32)
    a = jax.random.normal(k_a, (batch, act_dim), dtype=jnp.float32)
    params = init_params(k_p, obs_dim, act_dim, hidden=256)

    q = jax.block_until_ready(qnetwork_td3_forward(x, a, params))
    q_ref = _reference(x, a, params)
    assert q.shape == (batch, 1), q.shape
    assert jnp.allclose(q, q_ref, atol=2e-3, rtol=2e-3), (q, q_ref)

    # Larger batch: exercises the multi-tile grid (grid_b >= 2), right-sized
    # batch tiles (minimal padding) and the lane-dense output slab.
    big_batch = 600
    xb = jax.random.normal(k_x, (big_batch, obs_dim), dtype=jnp.float32)
    ab = jax.random.normal(k_a, (big_batch, act_dim), dtype=jnp.float32)
    qb = jax.block_until_ready(
        qnetwork_td3_forward(xb, ab, params, block_b=256))
    qb_ref = _reference(xb, ab, params)
    assert qb.shape == (big_batch, 1), qb.shape
    assert jnp.allclose(qb, qb_ref, atol=2e-3, rtol=2e-3)

    print("KERNEL_OK")
</pallas_src>

<mosaic_0001>
module attributes {stable_mosaic.version = 11 : i64} {
  func.func @_qnet_kernel(%arg0: i32, %arg1: memref<2x16xf32, #tpu.memory_space<vmem>>, %arg2: memref<2x8xf32, #tpu.memory_space<vmem>>, %arg3: memref<24x256xbf16, #tpu.memory_space<vmem>>, %arg4: memref<1x256xf32, #tpu.memory_space<vmem>>, %arg5: memref<256x256xbf16, #tpu.memory_space<vmem>>, %arg6: memref<1x256xf32, #tpu.memory_space<vmem>>, %arg7: memref<1x256xbf16, #tpu.memory_space<vmem>>, %arg8: memref<1xf32, #tpu.memory_space<smem>>, %arg9: memref<1x1x2xf32, #tpu.memory_space<vmem>>) attributes {dimension_semantics = [#tpu.dimension_semantics<parallel>], iteration_bounds = array<i64: 1>, scalar_prefetch = 0 : i64, scratch_operands = 0 : i64, tpu.core_type = #tpu.core_type<tc>, window_params = [{transform_indices = @transform_0, window_bounds = array<i64: 2, 16>}, {transform_indices = @transform_1, window_bounds = array<i64: 2, 8>}, {pipeline_mode = #tpu.pipeline_mode<synchronous>, transform_indices = @transform_2, window_bounds = array<i64: 24, 256>}, {pipeline_mode = #tpu.pipeline_mode<synchronous>, transform_indices = @transform_3, window_bounds = array<i64: 1, 256>}, {pipeline_mode = #tpu.pipeline_mode<synchronous>, transform_indices = @transform_4, window_bounds = array<i64: 256, 256>}, {pipeline_mode = #tpu.pipeline_mode<synchronous>, transform_indices = @transform_5, window_bounds = array<i64: 1, 256>}, {pipeline_mode = #tpu.pipeline_mode<synchronous>, transform_indices = @transform_6, window_bounds = array<i64: 1, 256>}, {transform_indices = @transform_7, window_bounds = array<i64: 1>}, {transform_indices = @transform_8, window_bounds = array<i64: 1, 1, 2>}]} {
    %c0 = arith.constant 0 : index
    %c0_0 = arith.constant 0 : index
    %0 = vector.load %arg1[%c0, %c0_0] : memref<2x16xf32, #tpu.memory_space<vmem>>, vector<2x16xf32>
    %c0_1 = arith.constant 0 : index
    %c0_2 = arith.constant 0 : index
    %1 = vector.load %arg2[%c0_1, %c0_2] : memref<2x8xf32, #tpu.memory_space<vmem>>, vector<2x8xf32>
    %2 = tpu.concatenate %0, %1 in 1 : vector<2x16xf32>, vector<2x8xf32> -> vector<2x24xf32>
    %3 = arith.truncf %2 : vector<2x24xf32> to vector<2x24xbf16>
    %c0_3 = arith.constant 0 : index
    %c0_4 = arith.constant 0 : index
    %4 = vector.load %arg3[%c0_3, %c0_4] : memref<24x256xbf16, #tpu.memory_space<vmem>>, vector<24x256xbf16>
    %cst = arith.constant dense<0.000000e+00> : vector<2x256xf32>
    %5 = tpu.matmul %3, %4, %cst {dimension_numbers = #tpu.dot_dimension_numbers<[1], [0], [0], [1], [0, 0, 1, 1], [], []>} : vector<2x24xbf16>, vector<24x256xbf16>, vector<2x256xf32> -> vector<2x256xf32>
    %c0_5 = arith.constant 0 : index
    %c0_6 = arith.constant 0 : index
    %6 = vector.load %arg4[%c0_5, %c0_6] : memref<1x256xf32, #tpu.memory_space<vmem>>, vector<1x256xf32>
    %7 = vector.broadcast %6 : vector<1x256xf32> to vector<2x256xf32>
    %8 = arith.addf %5, %7 : vector<2x256xf32>
    %cst_7 = arith.constant 0.000000e+00 : f32
    %9 = vector.broadcast %cst_7 : f32 to vector<2x256xf32>
    %10 = arith.maximumf %8, %9 : vector<2x256xf32>
    %11 = arith.truncf %10 : vector<2x256xf32> to vector<2x256xbf16>
    %c0_8 = arith.constant 0 : index
    %c0_9 = arith.constant 0 : index
    %12 = vector.load %arg5[%c0_8, %c0_9] : memref<256x256xbf16, #tpu.memory_space<vmem>>, vector<256x256xbf16>
    %cst_10 = arith.constant dense<0.000000e+00> : vector<2x256xf32>
    %13 = tpu.matmul %11, %12, %cst_10 {dimension_numbers = #tpu.dot_dimension_numbers<[1], [0], [0], [1], [0, 0, 1, 1], [], []>} : vector<2x256xbf16>, vector<256x256xbf16>, vector<2x256xf32> -> vector<2x256xf32>
    %c0_11 = arith.constant 0 : index
    %c0_12 = arith.constant 0 : index
    %14 = vector.load %arg6[%c0_11, %c0_12] : memref<1x256xf32, #tpu.memory_space<vmem>>, vector<1x256xf32>
    %15 = vector.broadcast %14 : vector<1x256xf32> to vector<2x256xf32>
    %16 = arith.addf %13, %15 : vector<2x256xf32>
    %cst_13 = arith.constant 0.000000e+00 : f32
    %17 = vector.broadcast %cst_13 : f32 to vector<2x256xf32>
    %18 = arith.maximumf %16, %17 : vector<2x256xf32>
    %c0_14 = arith.constant 0 : index
    %c0_15 = arith.constant 0 : index
    %19 = vector.load %arg7[%c0_14, %c0_15] : memref<1x256xbf16, #tpu.memory_space<vmem>>, vector<1x256xbf16>
    %20 = arith.truncf %18 : vector<2x256xf32> to vector<2x256xbf16>
    %cst_16 = arith.constant dense<0.000000e+00> : vector<1x2xf32>
    %21 = tpu.matmul %19, %20, %cst_16 {dimension_numbers = #tpu.dot_dimension_numbers<[1], [1], [0], [0], [0, 0, 1, 0], [], []>} : vector<1x256xbf16>, vector<2x256xbf16>, vector<1x2xf32> -> vector<1x2xf32>
    %c0_17 = arith.constant 0 : index
    %22 = memref.load %arg8[%c0_17] : memref<1xf32, #tpu.memory_space<smem>>
    %23 = vector.broadcast %22 : f32 to vector<1x2xf32>
    %24 = arith.addf %21, %23 : vector<1x2xf32>
    %25 = vector.shape_cast %24 : vector<1x2xf32> to vector<1x1x2xf32>
    %c0_18 = arith.constant 0 : index
    %c0_19 = arith.constant 0 : index
    %c0_20 = arith.constant 0 : index
    %26 = vector.load %arg9[%c0_18, %c0_19, %c0_20] : memref<1x1x2xf32, #tpu.memory_space<vmem>>, vector<1x1x2xf32>
    tpu.vector_store %arg9[%c0_18, %c0_19, %c0_20], %25 {strides = array<i32>} : memref<1x1x2xf32, #tpu.memory_space<vmem>>, vector<1x1x2xf32>,
    return
  }
  func.func @transform_0(%arg0: i32) -> (i32, i32) {
    %c0_i32 = arith.constant 0 : i32
    %c0_i32_0 = arith.constant 0 : i32
    return %arg0, %c0_i32 : i32, i32
  }
  func.func @transform_1(%arg0: i32) -> (i32, i32) {
    %c0_i32 = arith.constant 0 : i32
    %c0_i32_0 = arith.constant 0 : i32
    return %arg0, %c0_i32 : i32, i32
  }
  func.func @transform_2(%arg0: i32) -> (i32, i32) {
    %c0_i32 = arith.constant 0 : i32
    %c0_i32_0 = arith.constant 0 : i32
    %c0_i32_1 = arith.constant 0 : i32
    return %c0_i32, %c0_i32_0 : i32, i32
  }
  func.func @transform_3(%arg0: i32) -> (i32, i32) {
    %c0_i32 = arith.constant 0 : i32
    %c0_i32_0 = arith.constant 0 : i32
    %c0_i32_1 = arith.constant 0 : i32
    return %c0_i32, %c0_i32_0 : i32, i32
  }
  func.func @transform_4(%arg0: i32) -> (i32, i32) {
    %c0_i32 = arith.constant 0 : i32
    %c0_i32_0 = arith.constant 0 : i32
    %c0_i32_1 = arith.constant 0 : i32
    return %c0_i32, %c0_i32_0 : i32, i32
  }
  func.func @transform_5(%arg0: i32) -> (i32, i32) {
    %c0_i32 = arith.constant 0 : i32
    %c0_i32_0 = arith.constant 0 : i32
    %c0_i32_1 = arith.constant 0 : i32
    return %c0_i32, %c0_i32_0 : i32, i32
  }
  func.func @transform_6(%arg0: i32) -> (i32, i32) {
    %c0_i32 = arith.constant 0 : i32
    %c0_i32_0 = arith.constant 0 : i32
    %c0_i32_1 = arith.constant 0 : i32
    return %c0_i32, %c0_i32_0 : i32, i32
  }
  func.func @transform_7(%arg0: i32) -> i32 {
    %c0_i32 = arith.constant 0 : i32
    %c0_i32_0 = arith.constant 0 : i32
    return %c0_i32 : i32
  }
  func.func @transform_8(%arg0: i32) -> (i32, i32, i32) {
    %c0_i32 = arith.constant 0 : i32
    %c0_i32_0 = arith.constant 0 : i32
    %c0_i32_1 = arith.constant 0 : i32
    return %arg0, %c0_i32, %c0_i32_0 : i32, i32, i32
  }
}

</mosaic_0001>

<llo_original>
// kernel: tpu_custom_call.1
$region0: #{tpu_custom_call.1}
  #allocation0 [shape = 'u32[]', space=smem, size = 0x4, offset = 0x4, fixed_abs, tag = 'smem constant byte address 0x4 - core index']
  #allocation1 [shape = 'u32[144,128]{1,0:T(1,128)}', space=vmem, size = 0x12000, scoped, tag = 'internal scratch']
  #allocation2 [shape = 'f32[1]{0:T(128)S(6)}', space=smem, size = 0x200, scoped, tag = 'scoped memory for tpu_custom_call.1']
  %s0 = inlined_call_operand.vmem [shape: f32[2,16], index: 0, kind: input, shape index: {}]
  %s1 = inlined_call_operand.vmem [shape: f32[2,8], index: 1, kind: input, shape index: {}]
  %s2 = inlined_call_operand.hbm [shape: bf16[24,256], index: 2, kind: input, shape index: {}]
  %s3 = inlined_call_operand.vmem [shape: f32[1,256], index: 3, kind: input, shape index: {}]
  %s4 = inlined_call_operand.hbm [shape: bf16[256,256], index: 4, kind: input, shape index: {}]
  %s5 = inlined_call_operand.vmem [shape: f32[1,256], index: 5, kind: input, shape index: {}]
  %s6 = inlined_call_operand.vmem [shape: bf16[1,256], index: 6, kind: input, shape index: {}]
  %s7 = inlined_call_operand.<no memory space> [shape: f32[1], index: 7, kind: input, shape index: {}]
  %s8 = inlined_call_operand.hbm [shape: f32[1,1,2], index: 8, kind: output, shape index: {}]
  %s9 = sld [smem:[#allocation0]]
  $region50: #{tpu_custom_call.1} parent=0
    _
  %s11 = ssub.s32 1, %s9
  %s12 = scalar_select 0, %s11, %s9
  %13 = sst [smem:[#allocation2]] %s7
  $region1: #{tpu_custom_call.1} parent=0
    #allocation3 [shape = 'u8[12288]{0}', space=vmem, size = 0x3000, scoped, tag = 'input window, operand 2, single buffered']
    #allocation4 [shape = 's32[1]{0}', space=sflag, size = 0x4, scoped, tag = 'scoped memory for tpu_custom_call.1']
    #allocation5 [shape = 's32[1]{0}', space=sflag, size = 0x4, scoped, tag = 'scoped memory for tpu_custom_call.1']
    #allocation6 [shape = 'u8[131072]{0}', space=vmem, size = 0x20000, scoped, tag = 'input window, operand 4, single buffered']
    #allocation7 [shape = 's32[1]{0}', space=sflag, size = 0x4, scoped, tag = 'scoped memory for tpu_custom_call.1']
    #allocation8 [shape = 'u8[512]{0}', space=vmem, size = 0x400, scoped, tag = 'output window, operand 0, single buffered']
    %14 = vsyncpa [#allocation4], 0
    %15 = vsyncpa [#allocation7], 0
    %16 = vsyncpa [#allocation5], 0
    // Predicated region
    $region2: #{tpu_custom_call.1} parent=1 // pred_check
      _
    $region3: #{tpu_custom_call.1} parent=1 // pred_check_branch
      %18 = sbr.rel (0) target = $region5
    $region4: #{tpu_custom_call.1} parent=1 // pred_region
      _
    $region5: #{tpu_custom_call.1} parent=1 // pred_fallthru
      _
    // Predicated region
    $region6: #{tpu_custom_call.1} parent=1 // pred_check
      _
    $region7: #{tpu_custom_call.1} parent=1 // pred_check_branch
      %20 = sbr.rel (0) target = $region9
    $region8: #{tpu_custom_call.1} parent=1 // pred_region
      _
    $region9: #{tpu_custom_call.1} parent=1 // pred_fallthru
      _
    // Predicated region
    $region10: #{tpu_custom_call.1} parent=1 // pred_check
      _
    $region11: #{tpu_custom_call.1} parent=1 // pred_check_branch
      %22 = sbr.rel (0) target = $region13
    $region12: #{tpu_custom_call.1} parent=1 // pred_region
      %s24 = ssub.s32 384, 384
      %25 = vsyncadd [#allocation4], %s24
      %s26 = sshll.u32 [#allocation3], 4
      %s27 = int_to_ptr.vmem [resolvable:$true] %s26
      %32 = dma.hbm_to_vmem [thread:$0]  %s2, 384, %s27, [#allocation4], 128, 128, 8
    $region13: #{tpu_custom_call.1} parent=1 // pred_fallthru
      _
    // Predicated region
    $region14: #{tpu_custom_call.1} parent=1 // pred_check
      _
    $region15: #{tpu_custom_call.1} parent=1 // pred_check_branch
      %34 = sbr.rel (0) target = $region17
    $region16: #{tpu_custom_call.1} parent=1 // pred_region
      _
    $region17: #{tpu_custom_call.1} parent=1 // pred_fallthru
      _
    // Predicated region
    $region18: #{tpu_custom_call.1} parent=1 // pred_check
      _
    $region19: #{tpu_custom_call.1} parent=1 // pred_check_branch
      %36 = sbr.rel (0) target = $region21
    $region20: #{tpu_custom_call.1} parent=1 // pred_region
      %s38 = ssub.s32 4096, 4096
      %39 = vsyncadd [#allocation7], %s38
      %s40 = sshll.u32 [#allocation6], 4
      %s41 = int_to_ptr.vmem [resolvable:$true] %s40
      %46 = dma.hbm_to_vmem [thread:$0]  %s4, 4096, %s41, [#allocation7], 128, 128, 8
    $region21: #{tpu_custom_call.1} parent=1 // pred_fallthru
      _
    // Predicated region
    $region22: #{tpu_custom_call.1} parent=1 // pred_check
      _
    $region23: #{tpu_custom_call.1} parent=1 // pred_check_branch
      %48 = sbr.rel (0) target = $region25
    $region24: #{tpu_custom_call.1} parent=1 // pred_region
      _
    $region25: #{tpu_custom_call.1} parent=1 // pred_fallthru
      _
    // Predicated region
    $region26: #{tpu_custom_call.1} parent=1 // pred_check
      _
    $region27: #{tpu_custom_call.1} parent=1 // pred_check_branch
      %50 = sbr.rel (0) target = $region29
    $region28: #{tpu_custom_call.1} parent=1 // pred_region
      _
    $region29: #{tpu_custom_call.1} parent=1 // pred_fallthru
      _
    // Predicated region
    $region30: #{tpu_custom_call.1} parent=1 // pred_check
      _
    $region31: #{tpu_custom_call.1} parent=1 // pred_check_branch
      %52 = sbr.rel (0) target = $region33
    $region32: #{tpu_custom_call.1} parent=1 // pred_region
      _
    $region33: #{tpu_custom_call.1} parent=1 // pred_fallthru
      _
    // Predicated region
    $region34: #{tpu_custom_call.1} parent=1 // pred_check
      _
    $region35: #{tpu_custom_call.1} parent=1 // pred_check_branch
      %54 = sbr.rel (0) target = $region37
    $region36: #{tpu_custom_call.1} parent=1 // pred_region
      %55 = dma.done [#allocation4], 384
    $region37: #{tpu_custom_call.1} parent=1 // pred_fallthru
      _
    // Predicated region
    $region38: #{tpu_custom_call.1} parent=1 // pred_check
      _
    $region39: #{tpu_custom_call.1} parent=1 // pred_check_branch
      %57 = sbr.rel (0) target = $region41
    $region40: #{tpu_custom_call.1} parent=1 // pred_region
      %58 = dma.done [#allocation7], 4096
    $region41: #{tpu_custom_call.1} parent=1 // pred_fallthru
      _
    %v60 = vld [vmem:[%s0] sm:$0x3]
    %v61 = vld [vmem:[%s1] sm:$0x3]
    %63 = vrot.lane.b32.xlu0 %v61, 16
    %v64 = vpop.permute.xlu0 %63
    %vm66 = vcmask 130048
    %v67 = vsel %vm66, %v60, %v64
    %v68 = vpack.c.bf16 %v67, %v67
    %v69 = vld [vmem:[#allocation3] sm:$0xff]
    %v70 = vld [vmem:[#allocation3 + $0x8] sm:$0xff]
    %v71 = vld [vmem:[#allocation3 + $0x10] sm:$0xff]
    %v72 = vld [vmem:[%s3] sm:$0x3]
    %v74 = vlaneseq
    %v75 = vshrl.u32 %v74, 7
    %v76 = vsub.s32 0, %v75
    %v77 = vrot.slane %v72, %v76
    %v78 = vlaneseq
    %v79 = vshrl.u32 %v78, 7
    %v80 = vsub.s32 1, %v79
    %v81 = vrot.slane %v72, %v80
    %v87 = vunpack.c.l.b16 %v69
    %v88 = vunpack.c.h.b16 %v69
    %v89 = vunpack.c.l.b16 %v70
    %v90 = vunpack.c.h.b16 %v70
    %v91 = vunpack.c.l.b16 %v71
    %v92 = vunpack.c.h.b16 %v71
    %v93 = vpack.c.b16 %v89, %v87
    %v94 = vpack.c.b16 %v90, %v88
    %v95 = vpack.c.b16 %v91, %v91
    %v96 = vpack.c.b16 %v92, %v92
    %vm99 = vcmask 195584
    %v101 = vsel %vm99, %v68, 0
    %vm103 = vcmask 1043456
    %v105 = vsel %vm103, %v95, 0
    %v108 = vsel %vm103, %v96, 0
    %110 = vmatprep.subr.bf16.mxu0 %v94
    %111 = vmatpush1.bf16.msra.mxu0 %v93
    %112 = vmatprep.subr.bf16.mxu0 %v108
    %113 = vmatpush1.bf16.msra.mxu0 %v105
    %114 = vmatprep.subr.bf16.mxu0 0
    %115 = vmatpush1.bf16.msra.mxu0 0
    %116 = vmatprep.subr.bf16.mxu0 0
    %117 = vmatpush1.bf16.msra.mxu0 0
    %118 = vmatprep.subr.bf16.mxu0 0
    %119 = vmatpush1.bf16.msra.mxu0 0
    %120 = vmatprep.subr.bf16.mxu0 0
    %121 = vmatpush1.bf16.msra.mxu0 0
    %122 = vmatprep.subr.bf16.mxu0 0
    %123 = vmatpush1.bf16.msra.mxu0 0
    %124 = vmatprep.subr.bf16.mxu0 0
    %125 = vmatpush1.bf16.msra.mxu0 0
    %126 = vmatprep.subr.bf16.mxu0 0
    %127 = vmatpush1.bf16.msra.mxu0 0
    %128 = vmatprep.subr.bf16.mxu0 0
    %129 = vmatpush1.bf16.msra.mxu0 0
    %130 = vmatprep.subr.bf16.mxu0 0
    %131 = vmatpush1.bf16.msra.mxu0 0
    %132 = vmatprep.subr.bf16.mxu0 0
    %133 = vmatpush1.bf16.msra.mxu0 0
    %134 = vmatprep.subr.bf16.mxu0 0
    %135 = vmatpush1.bf16.msra.mxu0 0
    %136 = vmatprep.subr.bf16.mxu0 0
    %137 = vmatpush1.bf16.msra.mxu0 0
    %138 = vmatprep.subr.bf16.mxu0 0
    %139 = vmatpush1.bf16.msra.mxu0 0
    %140 = vmatprep.subr.bf16.mxu0 0
    %141 = vmatpush1.bf16.msra.mxu0 0
    %142 = vmatprep.mubr.bf16.mxu0 0
    %143 = vmatmul.mubr.bf16.gmra.mrb[0].mxu0 %v101
    %v144 = vpop.f32.mrb[0].mxu0
    %v145 = vadd.f32 %v77, %v144
    %v146 = vpop.f32.mrb[0].mxu0
    %v147 = vadd.f32 %v81, %v146
    %v148 = vpop.f32.mrb[0].mxu0
    %v149 = vpop.f32.mrb[0].mxu0
    %150 = vdwg.mxu0
    %v151 = vmax.f32 %v145, 0.0
    %v152 = vmax.f32 %v147, 0.0
    %v153 = vpack.c.bf16 %v151, %v151
    %v154 = vpack.c.bf16 %v152, %v152
    %v155 = vld [vmem:[#allocation6] sm:$0xff]
    %v156 = vld [vmem:[#allocation6 + $0x8] sm:$0xff]
    %v157 = vld [vmem:[#allocation6 + $0x10] sm:$0xff]
    %v158 = vld [vmem:[#allocation6 + $0x18] sm:$0xff]
    %v159 = vld [vmem:[#allocation6 + $0x20] sm:$0xff]
    %v160 = vld [vmem:[#allocation6 + $0x28] sm:$0xff]
    %v161 = vld [vmem:[#allocation6 + $0x30] sm:$0xff]
    %v162 = vld [vmem:[#allocation6 + $0x38] sm:$0xff]
    %v163 = vld [vmem:[#allocation6 + $0x40] sm:$0xff]
    %v164 = vld [vmem:[#allocation6 + $0x48] sm:$0xff]
    %v165 = vld [vmem:[#allocation6 + $0x50] sm:$0xff]
    %v166 = vld [vmem:[#allocation6 + $0x58] sm:$0xff]
    %v167 = vld [vmem:[#allocation6 + $0x60] sm:$0xff]
    %v168 = vld [vmem:[#allocation6 + $0x68] sm:$0xff]
    %v169 = vld [vmem:[#allocation6 + $0x70] sm:$0xff]
    %v170 = vld [vmem:[#allocation6 + $0x78] sm:$0xff]
    %v171 = vld [vmem:[#allocation6 + $0x80] sm:$0xff]
    %v172 = vld [vmem:[#allocation6 + $0x88] sm:$0xff]
    %v173 = vld [vmem:[#allocation6 + $0x90] sm:$0xff]
    %v174 = vld [vmem:[#allocation6 + $0x98] sm:$0xff]
    %v175 = vld [vmem:[#allocation6 + $0xa0] sm:$0xff]
    %v176 = vld [vmem:[#allocation6 + $0xa8] sm:$0xff]
    %v177 = vld [vmem:[#allocation6 + $0xb0] sm:$0xff]
    %v178 = vld [vmem:[#allocation6 + $0xb8] sm:$0xff]
    %v179 = vld [vmem:[#allocation6 + $0xc0] sm:$0xff]
    %v180 = vld [vmem:[#allocation6 + $0xc8] sm:$0xff]
    %v181 = vld [vmem:[#allocation6 + $0xd0] sm:$0xff]
    %v182 = vld [vmem:[#allocation6 + $0xd8] sm:$0xff]
    %v183 = vld [vmem:[#allocation6 + $0xe0] sm:$0xff]
    %v184 = vld [vmem:[#allocation6 + $0xe8] sm:$0xff]
    %v185 = vld [vmem:[#allocation6 + $0xf0] sm:$0xff]
    %v186 = vld [vmem:[#allocation6 + $0xf8] sm:$0xff]
    %v187 = vld [vmem:[%s5] sm:$0x3]
    %v189 = vlaneseq
    %v190 = vshrl.u32 %v189, 7
    %v191 = vsub.s32 0, %v190
    %v192 = vrot.slane %v187, %v191
    %v193 = vlaneseq
    %v194 = vshrl.u32 %v193, 7
    %v195 = vsub.s32 1, %v194
    %v196 = vrot.slane %v187, %v195
    %v231 = vunpack.c.l.b16 %v155
    %v232 = vunpack.c.h.b16 %v155
    %v233 = vunpack.c.l.b16 %v156
    %v234 = vunpack.c.h.b16 %v156
    %v235 = vunpack.c.l.b16 %v157
    %v236 = vunpack.c.h.b16 %v157
    %v237 = vunpack.c.l.b16 %v158
    %v238 = vunpack.c.h.b16 %v158
    %v239 = vunpack.c.l.b16 %v159
    %v240 = vunpack.c.h.b16 %v159
    %v241 = vunpack.c.l.b16 %v160
    %v242 = vunpack.c.h.b16 %v160
    %v243 = vunpack.c.l.b16 %v161
    %v244 = vunpack.c.h.b16 %v161
    %v245 = vunpack.c.l.b16 %v162
    %v246 = vunpack.c.h.b16 %v162
    %v247 = vunpack.c.l.b16 %v163
    %v248 = vunpack.c.h.b16 %v163
    %v249 = vunpack.c.l.b16 %v164
    %v250 = vunpack.c.h.b16 %v164
    %v251 = vunpack.c.l.b16 %v165
    %v252 = vunpack.c.h.b16 %v165
    %v253 = vunpack.c.l.b16 %v166
    %v254 = vunpack.c.h.b16 %v166
    %v255 = vunpack.c.l.b16 %v167
    %v256 = vunpack.c.h.b16 %v167
    %v257 = vunpack.c.l.b16 %v168
    %v258 = vunpack.c.h.b16 %v168
    %v259 = vunpack.c.l.b16 %v169
    %v260 = vunpack.c.h.b16 %v169
    %v261 = vunpack.c.l.b16 %v170
    %v262 = vunpack.c.h.b16 %v170
    %v263 = vunpack.c.l.b16 %v171
    %v264 = vunpack.c.h.b16 %v171
    %v265 = vunpack.c.l.b16 %v172
    %v266 = vunpack.c.h.b16 %v172
    %v267 = vunpack.c.l.b16 %v173
    %v268 = vunpack.c.h.b16 %v173
    %v269 = vunpack.c.l.b16 %v174
    %v270 = vunpack.c.h.b16 %v174
    %v271 = vunpack.c.l.b16 %v175
    %v272 = vunpack.c.h.b16 %v175
    %v273 = vunpack.c.l.b16 %v176
    %v274 = vunpack.c.h.b16 %v176
    %v275 = vunpack.c.l.b16 %v177
    %v276 = vunpack.c.h.b16 %v177
    %v277 = vunpack.c.l.b16 %v178
    %v278 = vunpack.c.h.b16 %v178
    %v279 = vunpack.c.l.b16 %v179
    %v280 = vunpack.c.h.b16 %v179
    %v281 = vunpack.c.l.b16 %v180
    %v282 = vunpack.c.h.b16 %v180
    %v283 = vunpack.c.l.b16 %v181
    %v284 = vunpack.c.h.b16 %v181
    %v285 = vunpack.c.l.b16 %v182
    %v286 = vunpack.c.h.b16 %v182
    %v287 = vunpack.c.l.b16 %v183
    %v288 = vunpack.c.h.b16 %v183
    %v289 = vunpack.c.l.b16 %v184
    %v290 = vunpack.c.h.b16 %v184
    %v291 = vunpack.c.l.b16 %v185
    %v292 = vunpack.c.h.b16 %v185
    %v293 = vunpack.c.l.b16 %v186
    %v294 = vunpack.c.h.b16 %v186
    %v295 = vpack.c.b16 %v233, %v231
    %v296 = vpack.c.b16 %v234, %v232
    %v297 = vpack.c.b16 %v237, %v235
    %v298 = vpack.c.b16 %v238, %v236
    %v299 = vpack.c.b16 %v241, %v239
    %v300 = vpack.c.b16 %v242, %v240
    %v301 = vpack.c.b16 %v245, %v243
    %v302 = vpack.c.b16 %v246, %v244
    %v303 = vpack.c.b16 %v249, %v247
    %v304 = vpack.c.b16 %v250, %v248
    %v305 = vpack.c.b16 %v253, %v251
    %v306 = vpack.c.b16 %v254, %v252
    %v307 = vpack.c.b16 %v257, %v255
    %v308 = vpack.c.b16 %v258, %v256
    %v309 = vpack.c.b16 %v261, %v259
    %v310 = vpack.c.b16 %v262, %v260
    %v311 = vpack.c.b16 %v265, %v263
    %v312 = vpack.c.b16 %v266, %v264
    %v313 = vpack.c.b16 %v269, %v267
    %v314 = vpack.c.b16 %v270, %v268
    %v315 = vpack.c.b16 %v273, %v271
    %v316 = vpack.c.b16 %v274, %v272
    %v317 = vpack.c.b16 %v277, %v275
    %v318 = vpack.c.b16 %v278, %v276
    %v319 = vpack.c.b16 %v281, %v279
    %v320 = vpack.c.b16 %v282, %v280
    %v321 = vpack.c.b16 %v285, %v283
    %v322 = vpack.c.b16 %v286, %v284
    %v323 = vpack.c.b16 %v289, %v287
    %v324 = vpack.c.b16 %v290, %v288
    %v325 = vpack.c.b16 %v293, %v291
    %v326 = vpack.c.b16 %v294, %v292
    %359 = vmatprep.subr.bf16.mxu0 %v296
    %360 = vmatpush1.bf16.msra.mxu0 %v295
    %361 = vmatprep.subr.bf16.mxu0 %v298
    %362 = vmatpush1.bf16.msra.mxu0 %v297
    %363 = vmatprep.subr.bf16.mxu0 %v300
    %364 = vmatpush1.bf16.msra.mxu0 %v299
    %365 = vmatprep.subr.bf16.mxu0 %v302
    %366 = vmatpush1.bf16.msra.mxu0 %v301
    %367 = vmatprep.subr.bf16.mxu0 %v304
    %368 = vmatpush1.bf16.msra.mxu0 %v303
    %369 = vmatprep.subr.bf16.mxu0 %v306
    %370 = vmatpush1.bf16.msra.mxu0 %v305
    %371 = vmatprep.subr.bf16.mxu0 %v308
    %372 = vmatpush1.bf16.msra.mxu0 %v307
    %373 = vmatprep.subr.bf16.mxu0 %v310
    %374 = vmatpush1.bf16.msra.mxu0 %v309
    %375 = vmatprep.subr.bf16.mxu0 %v312
    %376 = vmatpush1.bf16.msra.mxu0 %v311
    %377 = vmatprep.subr.bf16.mxu0 %v314
    %378 = vmatpush1.bf16.msra.mxu0 %v313
    %379 = vmatprep.subr.bf16.mxu0 %v316
    %380 = vmatpush1.bf16.msra.mxu0 %v315
    %381 = vmatprep.subr.bf16.mxu0 %v318
    %382 = vmatpush1.bf16.msra.mxu0 %v317
    %383 = vmatprep.subr.bf16.mxu0 %v320
    %384 = vmatpush1.bf16.msra.mxu0 %v319
    %385 = vmatprep.subr.bf16.mxu0 %v322
    %386 = vmatpush1.bf16.msra.mxu0 %v321
    %387 = vmatprep.subr.bf16.mxu0 %v324
    %388 = vmatpush1.bf16.msra.mxu0 %v323
    %389 = vmatprep.subr.bf16.mxu0 %v326
    %390 = vmatpush1.bf16.msra.mxu0 %v325
    %391 = vmatprep.mubr.bf16.mxu0 %v154
    %392 = vmatmul.mubr.bf16.gmra.mrb[0].mxu0 %v153
    %v393 = vpop.f32.mrb[0].mxu0
    %v394 = vadd.f32 %v192, %v393
    %v395 = vpop.f32.mrb[0].mxu0
    %v396 = vadd.f32 %v196, %v395
    %v397 = vpop.f32.mrb[0].mxu0
    %v398 = vpop.f32.mrb[0].mxu0
    %399 = vdwg.mxu0
    %v400 = vmax.f32 %v394, 0.0
    %v401 = vmax.f32 %v396, 0.0
    %v402 = vld [vmem:[%s6] sm:$0x3]
    %v403 = vpack.c.bf16 %v400, %v400
    %v404 = vpack.c.bf16 %v401, %v401
    %s405 = sld [smem:[#allocation2]]
    %v406 = vstv %s405
    %v409 = vunpack.c.l.s4 1966171168
    %v410 = vunpack.c.0.s8 %v409
    %v411 = vlaneseq
    %v412 = vshrl.u32 %v411, 7
    %v413 = vsub.s32 %v410, %v412
    %v414 = vrot.slane %v402, %v413
    %v415 = vcombine.high %v414, %v414
    %v417 = vunpack.c.l.s4 1966171168
    %v418 = vunpack.c.0.s8 %v417
    %v419 = vlaneseq
    %v420 = vshrl.u32 %v419, 7
    %v421 = vsub.s32 %v418, %v420
    %v422 = vrot.slane %v414, %v421
    %v424 = vunpack.c.l.s4 1966171168
    %v425 = vunpack.c.0.s8 %v424
    %v426 = vlaneseq
    %v427 = vshrl.u32 %v426, 7
    %v428 = vsub.s32 %v425, %v427
    %v429 = vrot.slane %v415, %v428
    %432 = vmatprep.subr.bf16.mxu0 %v404
    %433 = vmatpush1.bf16.xpose.msra.mxu0 %v403
    %434 = vmatprep.subr.bf16.mxu0 0
    %435 = vmatpush1.bf16.xpose.msra.mxu0 0
    %436 = vmatprep.subr.bf16.mxu0 0
    %437 = vmatpush1.bf16.xpose.msra.mxu0 0
    %438 = vmatprep.subr.bf16.mxu0 0
    %439 = vmatpush1.bf16.xpose.msra.mxu0 0
    %440 = vmatprep.subr.bf16.mxu0 0
    %441 = vmatpush1.bf16.xpose.msra.mxu0 0
    %442 = vmatprep.subr.bf16.mxu0 0
    %443 = vmatpush1.bf16.xpose.msra.mxu0 0
    %444 = vmatprep.subr.bf16.mxu0 0
    %445 = vmatpush1.bf16.xpose.msra.mxu0 0
    %446 = vmatprep.subr.bf16.mxu0 0
    %447 = vmatpush1.bf16.xpose.msra.mxu0 0
    %448 = vmatprep.subr.bf16.mxu0 0
    %449 = vmatpush1.bf16.xpose.msra.mxu0 0
    %450 = vmatprep.subr.bf16.mxu0 0
    %451 = vmatpush1.bf16.xpose.msra.mxu0 0
    %452 = vmatprep.subr.bf16.mxu0 0
    %453 = vmatpush1.bf16.xpose.msra.mxu0 0
    %454 = vmatprep.subr.bf16.mxu0 0
    %455 = vmatpush1.bf16.xpose.msra.mxu0 0
    %456 = vmatprep.subr.bf16.mxu0 0
    %457 = vmatpush1.bf16.xpose.msra.mxu0 0
    %458 = vmatprep.subr.bf16.mxu0 0
    %459 = vmatpush1.bf16.xpose.msra.mxu0 0
    %460 = vmatprep.subr.bf16.mxu0 0
    %461 = vmatpush1.bf16.xpose.msra.mxu0 0
    %462 = vmatprep.subr.bf16.mxu0 0
    %463 = vmatpush1.bf16.xpose.msra.mxu0 0
    %464 = vmatprep.mubr.bf16.mxu0 %v429
    %465 = vmatmul.mubr.bf16.gmra.mrb[0].mxu0 %v422
    %v466 = vpop.f32.mrb[0].mxu0
    %v467 = vadd.f32 %v406, %v466
    %v468 = vpop.f32.mrb[0].mxu0
    %v469 = vpop.f32.mrb[0].mxu0
    %v470 = vpop.f32.mrb[0].mxu0
    %471 = vdwg.mxu0
    %vm472 = vcmask 8192
    %473 = vst.msk [vmem:[#allocation8] sm:$0x1] %vm472, %v467
    // Predicated region
    $region42: #{tpu_custom_call.1} parent=1 // pred_check
      _
    $region43: #{tpu_custom_call.1} parent=1 // pred_check_branch
      %475 = sbr.rel (0) target = $region45
    $region44: #{tpu_custom_call.1} parent=1 // pred_region
      %s477 = ssub.s32 16, 16
      %478 = vsyncadd [#allocation5], %s477
      %s480 = sshll.u32 [#allocation8], 4
      %s481 = int_to_ptr.vmem [resolvable:$true] %s480
      %483 = dma.vmem_to_hbm [thread:$0]  %s481, 16, %s8, [#allocation5]
    $region45: #{tpu_custom_call.1} parent=1 // pred_fallthru
      _
    // Predicated region
    $region46: #{tpu_custom_call.1} parent=1 // pred_check
      _
    $region47: #{tpu_custom_call.1} parent=1 // pred_check_branch
      %485 = sbr.rel (0) target = $region49
    $region48: #{tpu_custom_call.1} parent=1 // pred_region
      %486 = dma.done [#allocation5], 16
    $region49: #{tpu_custom_call.1} parent=1 // pred_fallthru
      _
    %487 = vsyncpa [#allocation4], 1
    %488 = vsyncpa [#allocation7], 1
    %489 = vsyncpa [#allocation5], 1

</llo_original>
